<compile_context>
chip_gen: v7x
topology: tpu7x:2x2x1
jax: 0.10.0
libtpu: 0.0.40
codegen_flags: <defaults>
</compile_context>

<pallas_src>
import jax
import jax.numpy as jnp
from jax.experimental import pallas as pl
from jax.experimental.pallas import tpu as pltpu


def _round_up(x, m):
    return (x + m - 1) // m * m


def _mlp_kernel(src_ref, ptd_ref,
                w0s_ref, w0p_ref, b0_ref,
                w1_ref, b1_ref,
                w2_ref, b2_ref,
                w3_ref, b3_ref,
                out_ref):
    cd = w0s_ref.dtype  # bf16 compute dtype for the MXU feeds

    # In-kernel cast of the streamed f32 inputs (removes the wrapper HBM pass).
    src = src_ref[...].astype(cd)
    ptd = ptd_ref[...].astype(cd)

    # input_proj: Linear(node_dim + ptd_dim -> final_dim) + ReLU (+ Dropout=id).
    # torch.cat is realized as a split matmul (mathematically exact).
    h = (jnp.dot(src, w0s_ref[...], preferred_element_type=jnp.float32)
         + jnp.dot(ptd, w0p_ref[...], preferred_element_type=jnp.float32)
         + b0_ref[...])
    h = jnp.maximum(h, 0.0)

    # fc_1: Linear(final_dim -> 64) + ReLU (+ Dropout=id).
    h = (jnp.dot(h.astype(cd), w1_ref[...],
                 preferred_element_type=jnp.float32) + b1_ref[...])
    h = jnp.maximum(h, 0.0)

    # fc_2: Linear(64 -> 32) + ReLU (+ Dropout=id).
    h = (jnp.dot(h.astype(cd), w2_ref[...],
                 preferred_element_type=jnp.float32) + b2_ref[...])
    h = jnp.maximum(h, 0.0)

    # fc_3: Linear(32 -> 1), as a [1,32] . [TILE_B,32]^T contraction so the
    # per-tile result is a lane-dense (1, TILE_B) row.
    out_row = jax.lax.dot_general(
        w3_ref[...], h,
        dimension_numbers=(((1,), (1,)), ((), ())),
        preferred_element_type=jnp.float32)
    out_ref[...] = out_row + b3_ref[...]


def mlp_with_ptd_forward(src_feat, ptd_feat, params, *, tile_b=2048):
    """src_feat: [B, node_dim], ptd_feat: [B, ptd_dim] -> [B] (== .squeeze(1))."""
    B, node_dim = src_feat.shape
    ptd_dim = ptd_feat.shape[1]
    final_dim = params["b0"].shape[1]

    # tile_b must be a multiple of 128 (lane-dense output row, sublane-aligned
    # input blocks); clamp it for small batches so the demo stays tiny.
    # On v7x, tile_b=4096 is also comfortably inside VMEM.
    tile_b = min(tile_b, _round_up(B, 128))
    num_tiles = pl.cdiv(B, tile_b)  # boundary block is masked by Pallas

    def _resident(arr):
        # Full-array block, constant block index: stays resident in VMEM
        # (no per-step re-DMA of the weights/biases).
        return pl.BlockSpec(arr.shape, lambda i: (0, 0))

    in_bytes = src_feat.dtype.itemsize
    flops = 2 * B * ((node_dim + ptd_dim) * final_dim
                     + final_dim * 64 + 64 * 32 + 32)
    bytes_accessed = (
        B * (node_dim + ptd_dim) * in_bytes                 # streamed inputs (f32)
        + B * 4                                             # f32 output row
        + sum(int(v.size) * v.dtype.itemsize for v in params.values()))

    out = pl.pallas_call(
        _mlp_kernel,
        out_shape=jax.ShapeDtypeStruct((1, B), jnp.float32),
        grid=(num_tiles,),
        in_specs=[
            pl.BlockSpec((tile_b, node_dim), lambda i: (i, 0)),
            pl.BlockSpec((tile_b, ptd_dim), lambda i: (i, 0)),
            _resident(params["w0_src"]),
            _resident(params["w0_ptd"]),
            _resident(params["b0"]),
            _resident(params["w1"]),
            _resident(params["b1"]),
            _resident(params["w2"]),
            _resident(params["b2"]),
            _resident(params["w3"]),
            _resident(params["b3"]),
        ],
        out_specs=pl.BlockSpec((1, tile_b), lambda i: (0, i)),
        compiler_params=pltpu.CompilerParams(
            dimension_semantics=("parallel",)),
        cost_estimate=pl.CostEstimate(
            flops=flops, transcendentals=0, bytes_accessed=bytes_accessed),
    )(src_feat, ptd_feat,
      params["w0_src"], params["w0_ptd"], params["b0"],
      params["w1"], params["b1"],
      params["w2"], params["b2"],
      params["w3"], params["b3"])

    return out.reshape(-1)


def init_params(key, node_dim=128, ptd_dim=128, final_dim=128,
                weight_dtype=jnp.bfloat16):
    """Parameters matching the module's layer shapes.

    input_proj uses nn.Linear default init (uniform +/- 1/sqrt(fan_in));
    fc_1/fc_2/fc_3 weights use kaiming_normal_ (biases keep Linear default).
    Wide matmul weights are stored transposed [in, out] in `weight_dtype`
    (bf16 by default).  fc_3 stays f32 in its natural [out=1, in=32] row layout.
    """
    ks = jax.random.split(key, 8)

    def uniform(k, shape, fan_in):
        bound = 1.0 / jnp.sqrt(fan_in)
        return jax.random.uniform(k, shape, jnp.float32, -bound, bound)

    def kaiming_w(k, fan_in, fan_out):
        std = jnp.sqrt(2.0 / fan_in)  # kaiming_normal_ default (relu gain)
        return jax.random.normal(k, (fan_in, fan_out), jnp.float32) * std

    in_dim = node_dim + ptd_dim
    w0 = uniform(ks[0], (in_dim, final_dim), in_dim)
    b0 = uniform(ks[1], (1, final_dim), in_dim)
    w1 = kaiming_w(ks[2], final_dim, 64)
    b1 = uniform(ks[3], (1, 64), final_dim)
    w2 = kaiming_w(ks[4], 64, 32)
    b2 = uniform(ks[5], (1, 32), 64)
    w3_row = kaiming_w(ks[6], 32, 1).T           # [1, 32], f32
    b3 = uniform(ks[7], (1, 1), 32)

    return {
        "w0_src": w0[:node_dim].astype(weight_dtype),
        "w0_ptd": w0[node_dim:].astype(weight_dtype),
        "b0": b0,
        "w1": w1.astype(weight_dtype), "b1": b1,
        "w2": w2.astype(weight_dtype), "b2": b2,
        "w3": w3_row, "b3": b3,
    }


def reference_forward(src_feat, ptd_feat, params):
    """Plain-JAX reference mirroring the kernel's mixed-precision math."""
    cd = params["w1"].dtype
    h = (jnp.dot(src_feat.astype(cd), params["w0_src"],
                 preferred_element_type=jnp.float32)
         + jnp.dot(ptd_feat.astype(cd), params["w0_ptd"],
                   preferred_element_type=jnp.float32)
         + params["b0"])
    h = jnp.maximum(h, 0.0)
    h = jnp.dot(h.astype(cd), params["w1"],
                preferred_element_type=jnp.float32) + params["b1"]
    h = jnp.maximum(h, 0.0)
    h = jnp.dot(h.astype(cd), params["w2"],
                preferred_element_type=jnp.float32) + params["b2"]
    h = jnp.maximum(h, 0.0)
    out = jax.lax.dot_general(
        params["w3"], h,
        dimension_numbers=(((1,), (1,)), ((), ())),
        preferred_element_type=jnp.float32) + params["b3"]
    return out[0, :]


if __name__ == "__main__":
    key = jax.random.PRNGKey(0)
    k_param, k_src, k_ptd = jax.random.split(key, 3)

    B, node_dim, ptd_dim, final_dim = 8, 128, 128, 128
    params = init_params(k_param, node_dim, ptd_dim, final_dim)
    src_feat = jax.random.normal(k_src, (B, node_dim), jnp.float32)
    ptd_feat = jax.random.normal(k_ptd, (B, ptd_dim), jnp.float32)

    out = mlp_with_ptd_forward(src_feat, ptd_feat, params)
    out = jax.block_until_ready(out)
    assert out.shape == (B,), out.shape

    ref = reference_forward(src_feat, ptd_feat, params)
    assert jnp.allclose(out, ref, atol=2e-2, rtol=2e-2), (out, ref)

    print("KERNEL_OK")
</pallas_src>

<mosaic_0001>
module attributes {stable_mosaic.version = 11 : i64} {
  func.func @_mlp_kernel(%arg0: i32, %arg1: memref<128x128xf32, #tpu.memory_space<vmem>>, %arg2: memref<128x128xf32, #tpu.memory_space<vmem>>, %arg3: memref<128x128xbf16, #tpu.memory_space<vmem>>, %arg4: memref<128x128xbf16, #tpu.memory_space<vmem>>, %arg5: memref<1x128xf32, #tpu.memory_space<vmem>>, %arg6: memref<128x64xbf16, #tpu.memory_space<vmem>>, %arg7: memref<1x64xf32, #tpu.memory_space<vmem>>, %arg8: memref<64x32xbf16, #tpu.memory_space<vmem>>, %arg9: memref<1x32xf32, #tpu.memory_space<vmem>>, %arg10: memref<1x32xf32, #tpu.memory_space<vmem>>, %arg11: memref<1x1xf32, #tpu.memory_space<vmem>>, %arg12: memref<1x128xf32, #tpu.memory_space<vmem>>) attributes {dimension_semantics = [#tpu.dimension_semantics<parallel>], iteration_bounds = array<i64: 1>, scalar_prefetch = 0 : i64, scratch_operands = 0 : i64, tpu.core_type = #tpu.core_type<tc>, window_params = [{transform_indices = @transform_0, window_bounds = array<i64: 128, 128>}, {transform_indices = @transform_1, window_bounds = array<i64: 128, 128>}, {pipeline_mode = #tpu.pipeline_mode<synchronous>, transform_indices = @transform_2, window_bounds = array<i64: 128, 128>}, {pipeline_mode = #tpu.pipeline_mode<synchronous>, transform_indices = @transform_3, window_bounds = array<i64: 128, 128>}, {pipeline_mode = #tpu.pipeline_mode<synchronous>, transform_indices = @transform_4, window_bounds = array<i64: 1, 128>}, {pipeline_mode = #tpu.pipeline_mode<synchronous>, transform_indices = @transform_5, window_bounds = array<i64: 128, 64>}, {pipeline_mode = #tpu.pipeline_mode<synchronous>, transform_indices = @transform_6, window_bounds = array<i64: 1, 64>}, {pipeline_mode = #tpu.pipeline_mode<synchronous>, transform_indices = @transform_7, window_bounds = array<i64: 64, 32>}, {pipeline_mode = #tpu.pipeline_mode<synchronous>, transform_indices = @transform_8, window_bounds = array<i64: 1, 32>}, {pipeline_mode = #tpu.pipeline_mode<synchronous>, transform_indices = @transform_9, window_bounds = array<i64: 1, 32>}, {pipeline_mode = #tpu.pipeline_mode<synchronous>, transform_indices = @transform_10, window_bounds = array<i64: 1, 1>}, {transform_indices = @transform_11, window_bounds = array<i64: 1, 128>}]} {
    %c0 = arith.constant 0 : index
    %c0_0 = arith.constant 0 : index
    %0 = vector.load %arg1[%c0, %c0_0] : memref<128x128xf32, #tpu.memory_space<vmem>>, vector<128x128xf32>
    %1 = arith.truncf %0 : vector<128x128xf32> to vector<128x128xbf16>
    %c0_1 = arith.constant 0 : index
    %c0_2 = arith.constant 0 : index
    %2 = vector.load %arg2[%c0_1, %c0_2] : memref<128x128xf32, #tpu.memory_space<vmem>>, vector<128x128xf32>
    %3 = arith.truncf %2 : vector<128x128xf32> to vector<128x128xbf16>
    %c0_3 = arith.constant 0 : index
    %c0_4 = arith.constant 0 : index
    %4 = vector.load %arg3[%c0_3, %c0_4] : memref<128x128xbf16, #tpu.memory_space<vmem>>, vector<128x128xbf16>
    %cst = arith.constant dense<0.000000e+00> : vector<128x128xf32>
    %5 = tpu.matmul %1, %4, %cst {dimension_numbers = #tpu.dot_dimension_numbers<[1], [0], [0], [1], [0, 0, 1, 1], [], []>} : vector<128x128xbf16>, vector<128x128xbf16>, vector<128x128xf32> -> vector<128x128xf32>
    %c0_5 = arith.constant 0 : index
    %c0_6 = arith.constant 0 : index
    %6 = vector.load %arg4[%c0_5, %c0_6] : memref<128x128xbf16, #tpu.memory_space<vmem>>, vector<128x128xbf16>
    %cst_7 = arith.constant dense<0.000000e+00> : vector<128x128xf32>
    %7 = tpu.matmul %3, %6, %cst_7 {dimension_numbers = #tpu.dot_dimension_numbers<[1], [0], [0], [1], [0, 0, 1, 1], [], []>} : vector<128x128xbf16>, vector<128x128xbf16>, vector<128x128xf32> -> vector<128x128xf32>
    %8 = arith.addf %5, %7 : vector<128x128xf32>
    %c0_8 = arith.constant 0 : index
    %c0_9 = arith.constant 0 : index
    %9 = vector.load %arg5[%c0_8, %c0_9] : memref<1x128xf32, #tpu.memory_space<vmem>>, vector<1x128xf32>
    %10 = vector.broadcast %9 : vector<1x128xf32> to vector<128x128xf32>
    %11 = arith.addf %8, %10 : vector<128x128xf32>
    %cst_10 = arith.constant 0.000000e+00 : f32
    %12 = vector.broadcast %cst_10 : f32 to vector<128x128xf32>
    %13 = arith.maximumf %11, %12 : vector<128x128xf32>
    %14 = arith.truncf %13 : vector<128x128xf32> to vector<128x128xbf16>
    %c0_11 = arith.constant 0 : index
    %c0_12 = arith.constant 0 : index
    %15 = vector.load %arg6[%c0_11, %c0_12] : memref<128x64xbf16, #tpu.memory_space<vmem>>, vector<128x64xbf16>
    %cst_13 = arith.constant dense<0.000000e+00> : vector<128x64xf32>
    %16 = tpu.matmul %14, %15, %cst_13 {dimension_numbers = #tpu.dot_dimension_numbers<[1], [0], [0], [1], [0, 0, 1, 1], [], []>} : vector<128x128xbf16>, vector<128x64xbf16>, vector<128x64xf32> -> vector<128x64xf32>
    %c0_14 = arith.constant 0 : index
    %c0_15 = arith.constant 0 : index
    %17 = vector.load %arg7[%c0_14, %c0_15] : memref<1x64xf32, #tpu.memory_space<vmem>>, vector<1x64xf32>
    %18 = vector.broadcast %17 : vector<1x64xf32> to vector<128x64xf32>
    %19 = arith.addf %16, %18 : vector<128x64xf32>
    %cst_16 = arith.constant 0.000000e+00 : f32
    %20 = vector.broadcast %cst_16 : f32 to vector<128x64xf32>
    %21 = arith.maximumf %19, %20 : vector<128x64xf32>
    %22 = arith.truncf %21 : vector<128x64xf32> to vector<128x64xbf16>
    %c0_17 = arith.constant 0 : index
    %c0_18 = arith.constant 0 : index
    %23 = vector.load %arg8[%c0_17, %c0_18] : memref<64x32xbf16, #tpu.memory_space<vmem>>, vector<64x32xbf16>
    %cst_19 = arith.constant dense<0.000000e+00> : vector<128x32xf32>
    %24 = tpu.matmul %22, %23, %cst_19 {dimension_numbers = #tpu.dot_dimension_numbers<[1], [0], [0], [1], [0, 0, 1, 1], [], []>} : vector<128x64xbf16>, vector<64x32xbf16>, vector<128x32xf32> -> vector<128x32xf32>
    %c0_20 = arith.constant 0 : index
    %c0_21 = arith.constant 0 : index
    %25 = vector.load %arg9[%c0_20, %c0_21] : memref<1x32xf32, #tpu.memory_space<vmem>>, vector<1x32xf32>
    %26 = vector.broadcast %25 : vector<1x32xf32> to vector<128x32xf32>
    %27 = arith.addf %24, %26 : vector<128x32xf32>
    %cst_22 = arith.constant 0.000000e+00 : f32
    %28 = vector.broadcast %cst_22 : f32 to vector<128x32xf32>
    %29 = arith.maximumf %27, %28 : vector<128x32xf32>
    %c0_23 = arith.constant 0 : index
    %c0_24 = arith.constant 0 : index
    %30 = vector.load %arg10[%c0_23, %c0_24] : memref<1x32xf32, #tpu.memory_space<vmem>>, vector<1x32xf32>
    %cst_25 = arith.constant dense<0.000000e+00> : vector<1x128xf32>
    %31 = tpu.matmul %30, %29, %cst_25 {dimension_numbers = #tpu.dot_dimension_numbers<[1], [1], [0], [0], [0, 0, 1, 0], [], []>} : vector<1x32xf32>, vector<128x32xf32>, vector<1x128xf32> -> vector<1x128xf32>
    %c0_26 = arith.constant 0 : index
    %c0_27 = arith.constant 0 : index
    %32 = vector.load %arg11[%c0_26, %c0_27] : memref<1x1xf32, #tpu.memory_space<vmem>>, vector<1x1xf32>
    %33 = vector.broadcast %32 : vector<1x1xf32> to vector<1x128xf32>
    %34 = arith.addf %31, %33 : vector<1x128xf32>
    %c0_28 = arith.constant 0 : index
    %c0_29 = arith.constant 0 : index
    %35 = vector.load %arg12[%c0_28, %c0_29] : memref<1x128xf32, #tpu.memory_space<vmem>>, vector<1x128xf32>
    tpu.vector_store %arg12[%c0_28, %c0_29], %34 {strides = array<i32>} : memref<1x128xf32, #tpu.memory_space<vmem>>, vector<1x128xf32>,
    return
  }
  func.func @transform_0(%arg0: i32) -> (i32, i32) {
    %c0_i32 = arith.constant 0 : i32
    %c0_i32_0 = arith.constant 0 : i32
    return %arg0, %c0_i32 : i32, i32
  }
  func.func @transform_1(%arg0: i32) -> (i32, i32) {
    %c0_i32 = arith.constant 0 : i32
    %c0_i32_0 = arith.constant 0 : i32
    return %arg0, %c0_i32 : i32, i32
  }
  func.func @transform_2(%arg0: i32) -> (i32, i32) {
    %c0_i32 = arith.constant 0 : i32
    %c0_i32_0 = arith.constant 0 : i32
    %c0_i32_1 = arith.constant 0 : i32
    return %c0_i32, %c0_i32_0 : i32, i32
  }
  func.func @transform_3(%arg0: i32) -> (i32, i32) {
    %c0_i32 = arith.constant 0 : i32
    %c0_i32_0 = arith.constant 0 : i32
    %c0_i32_1 = arith.constant 0 : i32
    return %c0_i32, %c0_i32_0 : i32, i32
  }
  func.func @transform_4(%arg0: i32) -> (i32, i32) {
    %c0_i32 = arith.constant 0 : i32
    %c0_i32_0 = arith.constant 0 : i32
    %c0_i32_1 = arith.constant 0 : i32
    return %c0_i32, %c0_i32_0 : i32, i32
  }
  func.func @transform_5(%arg0: i32) -> (i32, i32) {
    %c0_i32 = arith.constant 0 : i32
    %c0_i32_0 = arith.constant 0 : i32
    %c0_i32_1 = arith.constant 0 : i32
    return %c0_i32, %c0_i32_0 : i32, i32
  }
  func.func @transform_6(%arg0: i32) -> (i32, i32) {
    %c0_i32 = arith.constant 0 : i32
    %c0_i32_0 = arith.constant 0 : i32
    %c0_i32_1 = arith.constant 0 : i32
    return %c0_i32, %c0_i32_0 : i32, i32
  }
  func.func @transform_7(%arg0: i32) -> (i32, i32) {
    %c0_i32 = arith.constant 0 : i32
    %c0_i32_0 = arith.constant 0 : i32
    %c0_i32_1 = arith.constant 0 : i32
    return %c0_i32, %c0_i32_0 : i32, i32
  }
  func.func @transform_8(%arg0: i32) -> (i32, i32) {
    %c0_i32 = arith.constant 0 : i32
    %c0_i32_0 = arith.constant 0 : i32
    %c0_i32_1 = arith.constant 0 : i32
    return %c0_i32, %c0_i32_0 : i32, i32
  }
  func.func @transform_9(%arg0: i32) -> (i32, i32) {
    %c0_i32 = arith.constant 0 : i32
    %c0_i32_0 = arith.constant 0 : i32
    %c0_i32_1 = arith.constant 0 : i32
    return %c0_i32, %c0_i32_0 : i32, i32
  }
  func.func @transform_10(%arg0: i32) -> (i32, i32) {
    %c0_i32 = arith.constant 0 : i32
    %c0_i32_0 = arith.constant 0 : i32
    %c0_i32_1 = arith.constant 0 : i32
    return %c0_i32, %c0_i32_0 : i32, i32
  }
  func.func @transform_11(%arg0: i32) -> (i32, i32) {
    %c0_i32 = arith.constant 0 : i32
    %c0_i32_0 = arith.constant 0 : i32
    return %c0_i32, %arg0 : i32, i32
  }
}

</mosaic_0001>

<llo_original>
// kernel: tpu_custom_call.1
$region0: #{tpu_custom_call.1}
  #allocation0 [shape = 'u32[]', space=smem, size = 0x4, offset = 0x4, fixed_abs, tag = 'smem constant byte address 0x4 - core index']
  #allocation1 [shape = 'u32[144,128]{1,0:T(1,128)}', space=vmem, size = 0x12000, scoped, tag = 'internal scratch']
  #allocation2 [shape = 'f32[1,1]{1,0:T(1,128)S(1)}', space=vmem, size = 0x200, scoped, tag = 'scoped memory for tpu_custom_call.1']
  %s0 = inlined_call_operand.hbm [shape: f32[8,128], index: 0, kind: input, shape index: {}]
  %s1 = inlined_call_operand.hbm [shape: f32[8,128], index: 1, kind: input, shape index: {}]
  %s2 = inlined_call_operand.vmem [shape: bf16[128,128], index: 2, kind: input, shape index: {}]
  %s3 = inlined_call_operand.vmem [shape: bf16[128,128], index: 3, kind: input, shape index: {}]
  %s4 = inlined_call_operand.vmem [shape: f32[1,128], index: 4, kind: input, shape index: {}]
  %s5 = inlined_call_operand.vmem [shape: bf16[128,64], index: 5, kind: input, shape index: {}]
  %s6 = inlined_call_operand.vmem [shape: f32[1,64], index: 6, kind: input, shape index: {}]
  %s7 = inlined_call_operand.vmem [shape: bf16[64,32], index: 7, kind: input, shape index: {}]
  %s8 = inlined_call_operand.vmem [shape: f32[1,32], index: 8, kind: input, shape index: {}]
  %s9 = inlined_call_operand.vmem [shape: f32[1,32], index: 9, kind: input, shape index: {}]
  %s10 = inlined_call_operand.<no memory space> [shape: f32[1,1], index: 10, kind: input, shape index: {}]
  %s11 = inlined_call_operand.hbm [shape: f32[1,8], index: 11, kind: output, shape index: {}]
  %s12 = sld [smem:[#allocation0]]
  $region62: #{tpu_custom_call.1} parent=0
    _
  %s14 = ssub.s32 1, %s12
  %s15 = scalar_select 0, %s14, %s12
  %v16 = vstv %s10
  %17 = vst [vmem:[#allocation2] sm:$0x1] %v16
  $region1: #{tpu_custom_call.1} parent=0
    #allocation3 [shape = 'u8[65536]{0}', space=vmem, size = 0x10000, scoped, tag = 'input window, operand 0, single buffered']
    #allocation4 [shape = 's32[1]{0}', space=sflag, size = 0x4, scoped, tag = 'scoped memory for tpu_custom_call.1']
    #allocation5 [shape = 's32[1]{0}', space=sflag, size = 0x4, scoped, tag = 'scoped memory for tpu_custom_call.1']
    #allocation6 [shape = 'u8[65536]{0}', space=vmem, size = 0x10000, scoped, tag = 'input window, operand 1, single buffered']
    #allocation7 [shape = 's32[1]{0}', space=sflag, size = 0x4, scoped, tag = 'scoped memory for tpu_custom_call.1']
    #allocation8 [shape = 'u8[512]{0}', space=vmem, size = 0x400, scoped, tag = 'output window, operand 0, single buffered']
    %18 = vsyncpa [#allocation4], 0
    %19 = vsyncpa [#allocation7], 0
    %20 = vsyncpa [#allocation5], 0
    // Predicated region
    $region2: #{tpu_custom_call.1} parent=1 // pred_check
      _
    $region3: #{tpu_custom_call.1} parent=1 // pred_check_branch
      %22 = sbr.rel (0) target = $region5
    $region4: #{tpu_custom_call.1} parent=1 // pred_region
      %s24 = ssub.s32 2048, 128
      %25 = vsyncadd [#allocation4], %s24
      %s26 = sshll.u32 [#allocation3], 4
      %s27 = int_to_ptr.vmem [resolvable:$true] %s26
      %32 = dma.hbm_to_vmem [thread:$0]  %s0, 128, %s27, [#allocation4], 128, 128, 8
    $region5: #{tpu_custom_call.1} parent=1 // pred_fallthru
      _
    // Predicated region
    $region6: #{tpu_custom_call.1} parent=1 // pred_check
      _
    $region7: #{tpu_custom_call.1} parent=1 // pred_check_branch
      %34 = sbr.rel (0) target = $region9
    $region8: #{tpu_custom_call.1} parent=1 // pred_region
      %s36 = ssub.s32 2048, 128
      %37 = vsyncadd [#allocation7], %s36
      %s38 = sshll.u32 [#allocation6], 4
      %s39 = int_to_ptr.vmem [resolvable:$true] %s38
      %44 = dma.hbm_to_vmem [thread:$0]  %s1, 128, %s39, [#allocation7], 128, 128, 8
    $region9: #{tpu_custom_call.1} parent=1 // pred_fallthru
      _
    // Predicated region
    $region10: #{tpu_custom_call.1} parent=1 // pred_check
      _
    $region11: #{tpu_custom_call.1} parent=1 // pred_check_branch
      %46 = sbr.rel (0) target = $region13
    $region12: #{tpu_custom_call.1} parent=1 // pred_region
      _
    $region13: #{tpu_custom_call.1} parent=1 // pred_fallthru
      _
    // Predicated region
    $region14: #{tpu_custom_call.1} parent=1 // pred_check
      _
    $region15: #{tpu_custom_call.1} parent=1 // pred_check_branch
      %48 = sbr.rel (0) target = $region17
    $region16: #{tpu_custom_call.1} parent=1 // pred_region
      _
    $region17: #{tpu_custom_call.1} parent=1 // pred_fallthru
      _
    // Predicated region
    $region18: #{tpu_custom_call.1} parent=1 // pred_check
      _
    $region19: #{tpu_custom_call.1} parent=1 // pred_check_branch
      %50 = sbr.rel (0) target = $region21
    $region20: #{tpu_custom_call.1} parent=1 // pred_region
      _
    $region21: #{tpu_custom_call.1} parent=1 // pred_fallthru
      _
    // Predicated region
    $region22: #{tpu_custom_call.1} parent=1 // pred_check
      _
    $region23: #{tpu_custom_call.1} parent=1 // pred_check_branch
      %52 = sbr.rel (0) target = $region25
    $region24: #{tpu_custom_call.1} parent=1 // pred_region
      _
    $region25: #{tpu_custom_call.1} parent=1 // pred_fallthru
      _
    // Predicated region
    $region26: #{tpu_custom_call.1} parent=1 // pred_check
      _
    $region27: #{tpu_custom_call.1} parent=1 // pred_check_branch
      %54 = sbr.rel (0) target = $region29
    $region28: #{tpu_custom_call.1} parent=1 // pred_region
      _
    $region29: #{tpu_custom_call.1} parent=1 // pred_fallthru
      _
    // Predicated region
    $region30: #{tpu_custom_call.1} parent=1 // pred_check
      _
    $region31: #{tpu_custom_call.1} parent=1 // pred_check_branch
      %56 = sbr.rel (0) target = $region33
    $region32: #{tpu_custom_call.1} parent=1 // pred_region
      _
    $region33: #{tpu_custom_call.1} parent=1 // pred_fallthru
      _
    // Predicated region
    $region34: #{tpu_custom_call.1} parent=1 // pred_check
      _
    $region35: #{tpu_custom_call.1} parent=1 // pred_check_branch
      %58 = sbr.rel (0) target = $region37
    $region36: #{tpu_custom_call.1} parent=1 // pred_region
      _
    $region37: #{tpu_custom_call.1} parent=1 // pred_fallthru
      _
    // Predicated region
    $region38: #{tpu_custom_call.1} parent=1 // pred_check
      _
    $region39: #{tpu_custom_call.1} parent=1 // pred_check_branch
      %60 = sbr.rel (0) target = $region41
    $region40: #{tpu_custom_call.1} parent=1 // pred_region
      _
    $region41: #{tpu_custom_call.1} parent=1 // pred_fallthru
      _
    // Predicated region
    $region42: #{tpu_custom_call.1} parent=1 // pred_check
      _
    $region43: #{tpu_custom_call.1} parent=1 // pred_check_branch
      %62 = sbr.rel (0) target = $region45
    $region44: #{tpu_custom_call.1} parent=1 // pred_region
      _
    $region45: #{tpu_custom_call.1} parent=1 // pred_fallthru
      _
    // Predicated region
    $region46: #{tpu_custom_call.1} parent=1 // pred_check
      _
    $region47: #{tpu_custom_call.1} parent=1 // pred_check_branch
      %64 = sbr.rel (0) target = $region49
    $region48: #{tpu_custom_call.1} parent=1 // pred_region
      %65 = dma.done [#allocation4], 2048
    $region49: #{tpu_custom_call.1} parent=1 // pred_fallthru
      _
    // Predicated region
    $region50: #{tpu_custom_call.1} parent=1 // pred_check
      _
    $region51: #{tpu_custom_call.1} parent=1 // pred_check_branch
      %67 = sbr.rel (0) target = $region53
    $region52: #{tpu_custom_call.1} parent=1 // pred_region
      %68 = dma.done [#allocation7], 2048
    $region53: #{tpu_custom_call.1} parent=1 // pred_fallthru
      _
    %v70 = vld [vmem:[#allocation3] sm:$0xff]
    %v71 = vld [vmem:[#allocation3 + $0x8] sm:$0xff]
    %v72 = vld [vmem:[#allocation3 + $0x10] sm:$0xff]
    %v73 = vld [vmem:[#allocation3 + $0x18] sm:$0xff]
    %v74 = vld [vmem:[#allocation3 + $0x20] sm:$0xff]
    %v75 = vld [vmem:[#allocation3 + $0x28] sm:$0xff]
    %v76 = vld [vmem:[#allocation3 + $0x30] sm:$0xff]
    %v77 = vld [vmem:[#allocation3 + $0x38] sm:$0xff]
    %v78 = vld [vmem:[#allocation3 + $0x40] sm:$0xff]
    %v79 = vld [vmem:[#allocation3 + $0x48] sm:$0xff]
    %v80 = vld [vmem:[#allocation3 + $0x50] sm:$0xff]
    %v81 = vld [vmem:[#allocation3 + $0x58] sm:$0xff]
    %v82 = vld [vmem:[#allocation3 + $0x60] sm:$0xff]
    %v83 = vld [vmem:[#allocation3 + $0x68] sm:$0xff]
    %v84 = vld [vmem:[#allocation3 + $0x70] sm:$0xff]
    %v85 = vld [vmem:[#allocation3 + $0x78] sm:$0xff]
    %v86 = vpack.c.bf16 %v71, %v70
    %v87 = vpack.c.bf16 %v73, %v72
    %v88 = vpack.c.bf16 %v75, %v74
    %v89 = vpack.c.bf16 %v77, %v76
    %v90 = vpack.c.bf16 %v79, %v78
    %v91 = vpack.c.bf16 %v81, %v80
    %v92 = vpack.c.bf16 %v83, %v82
    %v93 = vpack.c.bf16 %v85, %v84
    %v94 = vld [vmem:[#allocation6] sm:$0xff]
    %v95 = vld [vmem:[#allocation6 + $0x8] sm:$0xff]
    %v96 = vld [vmem:[#allocation6 + $0x10] sm:$0xff]
    %v97 = vld [vmem:[#allocation6 + $0x18] sm:$0xff]
    %v98 = vld [vmem:[#allocation6 + $0x20] sm:$0xff]
    %v99 = vld [vmem:[#allocation6 + $0x28] sm:$0xff]
    %v100 = vld [vmem:[#allocation6 + $0x30] sm:$0xff]
    %v101 = vld [vmem:[#allocation6 + $0x38] sm:$0xff]
    %v102 = vld [vmem:[#allocation6 + $0x40] sm:$0xff]
    %v103 = vld [vmem:[#allocation6 + $0x48] sm:$0xff]
    %v104 = vld [vmem:[#allocation6 + $0x50] sm:$0xff]
    %v105 = vld [vmem:[#allocation6 + $0x58] sm:$0xff]
    %v106 = vld [vmem:[#allocation6 + $0x60] sm:$0xff]
    %v107 = vld [vmem:[#allocation6 + $0x68] sm:$0xff]
    %v108 = vld [vmem:[#allocation6 + $0x70] sm:$0xff]
    %v109 = vld [vmem:[#allocation6 + $0x78] sm:$0xff]
    %v110 = vpack.c.bf16 %v95, %v94
    %v111 = vpack.c.bf16 %v97, %v96
    %v112 = vpack.c.bf16 %v99, %v98
    %v113 = vpack.c.bf16 %v101, %v100
    %v114 = vpack.c.bf16 %v103, %v102
    %v115 = vpack.c.bf16 %v105, %v104
    %v116 = vpack.c.bf16 %v107, %v106
    %v117 = vpack.c.bf16 %v109, %v108
    %v118 = vld [vmem:[%s2] sm:$0xf]
    %v119 = vld [vmem:[%s2 + $0x4] sm:$0xf]
    %v120 = vld [vmem:[%s2 + $0x8] sm:$0xf]
    %v121 = vld [vmem:[%s2 + $0xc] sm:$0xf]
    %v122 = vld [vmem:[%s2 + $0x10] sm:$0xf]
    %v123 = vld [vmem:[%s2 + $0x14] sm:$0xf]
    %v124 = vld [vmem:[%s2 + $0x18] sm:$0xf]
    %v125 = vld [vmem:[%s2 + $0x1c] sm:$0xf]
    %v126 = vld [vmem:[%s2 + $0x20] sm:$0xf]
    %v127 = vld [vmem:[%s2 + $0x24] sm:$0xf]
    %v128 = vld [vmem:[%s2 + $0x28] sm:$0xf]
    %v129 = vld [vmem:[%s2 + $0x2c] sm:$0xf]
    %v130 = vld [vmem:[%s2 + $0x30] sm:$0xf]
    %v131 = vld [vmem:[%s2 + $0x34] sm:$0xf]
    %v132 = vld [vmem:[%s2 + $0x38] sm:$0xf]
    %v133 = vld [vmem:[%s2 + $0x3c] sm:$0xf]
    %v134 = vld [vmem:[%s3] sm:$0xf]
    %v135 = vld [vmem:[%s3 + $0x4] sm:$0xf]
    %v136 = vld [vmem:[%s3 + $0x8] sm:$0xf]
    %v137 = vld [vmem:[%s3 + $0xc] sm:$0xf]
    %v138 = vld [vmem:[%s3 + $0x10] sm:$0xf]
    %v139 = vld [vmem:[%s3 + $0x14] sm:$0xf]
    %v140 = vld [vmem:[%s3 + $0x18] sm:$0xf]
    %v141 = vld [vmem:[%s3 + $0x1c] sm:$0xf]
    %v142 = vld [vmem:[%s3 + $0x20] sm:$0xf]
    %v143 = vld [vmem:[%s3 + $0x24] sm:$0xf]
    %v144 = vld [vmem:[%s3 + $0x28] sm:$0xf]
    %v145 = vld [vmem:[%s3 + $0x2c] sm:$0xf]
    %v146 = vld [vmem:[%s3 + $0x30] sm:$0xf]
    %v147 = vld [vmem:[%s3 + $0x34] sm:$0xf]
    %v148 = vld [vmem:[%s3 + $0x38] sm:$0xf]
    %v149 = vld [vmem:[%s3 + $0x3c] sm:$0xf]
    %v166 = vunpack.c.l.b16 %v134
    %v167 = vunpack.c.l.b16 %v135
    %v168 = vunpack.c.l.b16 %v136
    %v169 = vunpack.c.l.b16 %v137
    %v170 = vunpack.c.l.b16 %v138
    %v171 = vunpack.c.l.b16 %v139
    %v172 = vunpack.c.l.b16 %v140
    %v173 = vunpack.c.l.b16 %v141
    %v174 = vunpack.c.l.b16 %v142
    %v175 = vunpack.c.l.b16 %v143
    %v176 = vunpack.c.l.b16 %v144
    %v177 = vunpack.c.l.b16 %v145
    %v178 = vunpack.c.l.b16 %v146
    %v179 = vunpack.c.l.b16 %v147
    %v180 = vunpack.c.l.b16 %v148
    %v181 = vunpack.c.l.b16 %v149
    %v182 = vpack.c.b16 %v167, %v166
    %v183 = vpack.c.b16 %v169, %v168
    %v184 = vpack.c.b16 %v171, %v170
    %v185 = vpack.c.b16 %v173, %v172
    %v186 = vpack.c.b16 %v175, %v174
    %v187 = vpack.c.b16 %v177, %v176
    %v188 = vpack.c.b16 %v179, %v178
    %v189 = vpack.c.b16 %v181, %v180
    %198 = vmatprep.subr.bf16.mxu0 0
    %199 = vmatpush1.bf16.msra.mxu0 %v182
    %200 = vmatprep.subr.bf16.mxu0 0
    %201 = vmatpush1.bf16.msra.mxu0 %v183
    %202 = vmatprep.subr.bf16.mxu0 0
    %203 = vmatpush1.bf16.msra.mxu0 %v184
    %204 = vmatprep.subr.bf16.mxu0 0
    %205 = vmatpush1.bf16.msra.mxu0 %v185
    %206 = vmatprep.subr.bf16.mxu0 0
    %207 = vmatpush1.bf16.msra.mxu0 %v186
    %208 = vmatprep.subr.bf16.mxu0 0
    %209 = vmatpush1.bf16.msra.mxu0 %v187
    %210 = vmatprep.subr.bf16.mxu0 0
    %211 = vmatpush1.bf16.msra.mxu0 %v188
    %212 = vmatprep.subr.bf16.mxu0 0
    %213 = vmatpush1.bf16.msra.mxu0 %v189
    %214 = vmatprep.subr.bf16.mxu0 0
    %215 = vmatpush1.bf16.msra.mxu0 0
    %216 = vmatprep.subr.bf16.mxu0 0
    %217 = vmatpush1.bf16.msra.mxu0 0
    %218 = vmatprep.subr.bf16.mxu0 0
    %219 = vmatpush1.bf16.msra.mxu0 0
    %220 = vmatprep.subr.bf16.mxu0 0
    %221 = vmatpush1.bf16.msra.mxu0 0
    %222 = vmatprep.subr.bf16.mxu0 0
    %223 = vmatpush1.bf16.msra.mxu0 0
    %224 = vmatprep.subr.bf16.mxu0 0
    %225 = vmatpush1.bf16.msra.mxu0 0
    %226 = vmatprep.subr.bf16.mxu0 0
    %227 = vmatpush1.bf16.msra.mxu0 0
    %228 = vmatprep.subr.bf16.mxu0 0
    %229 = vmatpush1.bf16.msra.mxu0 0
    %230 = vmatprep.mubr.bf16.mxu0 0
    %231 = vmatmul.mubr.bf16.gmra.mrb[0].mxu0 %v110
    %v232 = vpop.f32.mrb[0].mxu0
    %v233 = vadd.f32 0.0, %v232
    %v234 = vpop.f32.mrb[0].mxu0
    %v235 = vpop.f32.mrb[0].mxu0
    %v236 = vadd.f32 0.0, %v235
    %v237 = vpop.f32.mrb[0].mxu0
    %238 = vmatprep.mubr.bf16.mxu0 0
    %239 = vmatmul.mubr.bf16.gmra.mrb[0].mxu0 %v111
    %v240 = vpop.f32.mrb[0].mxu0
    %v241 = vadd.f32 0.0, %v240
    %v242 = vpop.f32.mrb[0].mxu0
    %v243 = vpop.f32.mrb[0].mxu0
    %v244 = vadd.f32 0.0, %v243
    %v245 = vpop.f32.mrb[0].mxu0
    %246 = vmatprep.mubr.bf16.mxu0 0
    %247 = vmatmul.mubr.bf16.gmra.mrb[0].mxu0 %v112
    %v248 = vpop.f32.mrb[0].mxu0
    %v249 = vadd.f32 0.0, %v248
    %v250 = vpop.f32.mrb[0].mxu0
    %v251 = vpop.f32.mrb[0].mxu0
    %v252 = vadd.f32 0.0, %v251
    %v253 = vpop.f32.mrb[0].mxu0
    %254 = vmatprep.mubr.bf16.mxu0 0
    %255 = vmatmul.mubr.bf16.gmra.mrb[0].mxu0 %v113
    %v256 = vpop.f32.mrb[0].mxu0
    %v257 = vadd.f32 0.0, %v256
    %v258 = vpop.f32.mrb[0].mxu0
    %v259 = vpop.f32.mrb[0].mxu0
    %v260 = vadd.f32 0.0, %v259
    %v261 = vpop.f32.mrb[0].mxu0
    %262 = vmatprep.mubr.bf16.mxu0 0
    %263 = vmatmul.mubr.bf16.gmra.mrb[0].mxu0 %v114
    %v264 = vpop.f32.mrb[0].mxu0
    %v265 = vadd.f32 0.0, %v264
    %v266 = vpop.f32.mrb[0].mxu0
    %v267 = vpop.f32.mrb[0].mxu0
    %v268 = vadd.f32 0.0, %v267
    %v269 = vpop.f32.mrb[0].mxu0
    %270 = vmatprep.mubr.bf16.mxu0 0
    %271 = vmatmul.mubr.bf16.gmra.mrb[0].mxu0 %v115
    %v272 = vpop.f32.mrb[0].mxu0
    %v273 = vadd.f32 0.0, %v272
    %v274 = vpop.f32.mrb[0].mxu0
    %v275 = vpop.f32.mrb[0].mxu0
    %v276 = vadd.f32 0.0, %v275
    %v277 = vpop.f32.mrb[0].mxu0
    %278 = vmatprep.mubr.bf16.mxu0 0
    %279 = vmatmul.mubr.bf16.gmra.mrb[0].mxu0 %v116
    %v280 = vpop.f32.mrb[0].mxu0
    %v281 = vadd.f32 0.0, %v280
    %v282 = vpop.f32.mrb[0].mxu0
    %v283 = vpop.f32.mrb[0].mxu0
    %v284 = vadd.f32 0.0, %v283
    %v285 = vpop.f32.mrb[0].mxu0
    %286 = vmatprep.mubr.bf16.mxu0 0
    %287 = vmatmul.mubr.bf16.gmra.mrb[0].mxu0 %v117
    %v288 = vpop.f32.mrb[0].mxu0
    %v289 = vadd.f32 0.0, %v288
    %v290 = vpop.f32.mrb[0].mxu0
    %v291 = vpop.f32.mrb[0].mxu0
    %v292 = vadd.f32 0.0, %v291
    %v293 = vpop.f32.mrb[0].mxu0
    %294 = vdwg.mxu0
    %v311 = vunpack.c.l.b16 %v118
    %v312 = vunpack.c.l.b16 %v119
    %v313 = vunpack.c.l.b16 %v120
    %v314 = vunpack.c.l.b16 %v121
    %v315 = vunpack.c.l.b16 %v122
    %v316 = vunpack.c.l.b16 %v123
    %v317 = vunpack.c.l.b16 %v124
    %v318 = vunpack.c.l.b16 %v125
    %v319 = vunpack.c.l.b16 %v126
    %v320 = vunpack.c.l.b16 %v127
    %v321 = vunpack.c.l.b16 %v128
    %v322 = vunpack.c.l.b16 %v129
    %v323 = vunpack.c.l.b16 %v130
    %v324 = vunpack.c.l.b16 %v131
    %v325 = vunpack.c.l.b16 %v132
    %v326 = vunpack.c.l.b16 %v133
    %v327 = vpack.c.b16 %v312, %v311
    %v328 = vpack.c.b16 %v314, %v313
    %v329 = vpack.c.b16 %v316, %v315
    %v330 = vpack.c.b16 %v318, %v317
    %v331 = vpack.c.b16 %v320, %v319
    %v332 = vpack.c.b16 %v322, %v321
    %v333 = vpack.c.b16 %v324, %v323
    %v334 = vpack.c.b16 %v326, %v325
    %343 = vmatprep.subr.bf16.mxu0 0
    %344 = vmatpush1.bf16.msra.mxu0 %v327
    %345 = vmatprep.subr.bf16.mxu0 0
    %346 = vmatpush1.bf16.msra.mxu0 %v328
    %347 = vmatprep.subr.bf16.mxu0 0
    %348 = vmatpush1.bf16.msra.mxu0 %v329
    %349 = vmatprep.subr.bf16.mxu0 0
    %350 = vmatpush1.bf16.msra.mxu0 %v330
    %351 = vmatprep.subr.bf16.mxu0 0
    %352 = vmatpush1.bf16.msra.mxu0 %v331
    %353 = vmatprep.subr.bf16.mxu0 0
    %354 = vmatpush1.bf16.msra.mxu0 %v332
    %355 = vmatprep.subr.bf16.mxu0 0
    %356 = vmatpush1.bf16.msra.mxu0 %v333
    %357 = vmatprep.subr.bf16.mxu0 0
    %358 = vmatpush1.bf16.msra.mxu0 %v334
    %359 = vmatprep.subr.bf16.mxu0 0
    %360 = vmatpush1.bf16.msra.mxu0 0
    %361 = vmatprep.subr.bf16.mxu0 0
    %362 = vmatpush1.bf16.msra.mxu0 0
    %363 = vmatprep.subr.bf16.mxu0 0
    %364 = vmatpush1.bf16.msra.mxu0 0
    %365 = vmatprep.subr.bf16.mxu0 0
    %366 = vmatpush1.bf16.msra.mxu0 0
    %367 = vmatprep.subr.bf16.mxu0 0
    %368 = vmatpush1.bf16.msra.mxu0 0
    %369 = vmatprep.subr.bf16.mxu0 0
    %370 = vmatpush1.bf16.msra.mxu0 0
    %371 = vmatprep.subr.bf16.mxu0 0
    %372 = vmatpush1.bf16.msra.mxu0 0
    %373 = vmatprep.subr.bf16.mxu0 0
    %374 = vmatpush1.bf16.msra.mxu0 0
    %375 = vmatprep.mubr.bf16.mxu0 0
    %376 = vmatmul.mubr.bf16.gmra.mrb[0].mxu0 %v86
    %v377 = vpop.f32.mrb[0].mxu0
    %v378 = vadd.f32 %v233, %v377
    %v379 = vpop.f32.mrb[0].mxu0
    %v380 = vpop.f32.mrb[0].mxu0
    %v381 = vadd.f32 %v236, %v380
    %v382 = vpop.f32.mrb[0].mxu0
    %383 = vmatprep.mubr.bf16.mxu0 0
    %384 = vmatmul.mubr.bf16.gmra.mrb[0].mxu0 %v87
    %v385 = vpop.f32.mrb[0].mxu0
    %v386 = vadd.f32 %v241, %v385
    %v387 = vpop.f32.mrb[0].mxu0
    %v388 = vpop.f32.mrb[0].mxu0
    %v389 = vadd.f32 %v244, %v388
    %v390 = vpop.f32.mrb[0].mxu0
    %391 = vmatprep.mubr.bf16.mxu0 0
    %392 = vmatmul.mubr.bf16.gmra.mrb[0].mxu0 %v88
    %v393 = vpop.f32.mrb[0].mxu0
    %v394 = vadd.f32 %v249, %v393
    %v395 = vpop.f32.mrb[0].mxu0
    %v396 = vpop.f32.mrb[0].mxu0
    %v397 = vadd.f32 %v252, %v396
    %v398 = vpop.f32.mrb[0].mxu0
    %399 = vmatprep.mubr.bf16.mxu0 0
    %400 = vmatmul.mubr.bf16.gmra.mrb[0].mxu0 %v89
    %v401 = vpop.f32.mrb[0].mxu0
    %v402 = vadd.f32 %v257, %v401
    %v403 = vpop.f32.mrb[0].mxu0
    %v404 = vpop.f32.mrb[0].mxu0
    %v405 = vadd.f32 %v260, %v404
    %v406 = vpop.f32.mrb[0].mxu0
    %407 = vmatprep.mubr.bf16.mxu0 0
    %408 = vmatmul.mubr.bf16.gmra.mrb[0].mxu0 %v90
    %v409 = vpop.f32.mrb[0].mxu0
    %v410 = vadd.f32 %v265, %v409
    %v411 = vpop.f32.mrb[0].mxu0
    %v412 = vpop.f32.mrb[0].mxu0
    %v413 = vadd.f32 %v268, %v412
    %v414 = vpop.f32.mrb[0].mxu0
    %415 = vmatprep.mubr.bf16.mxu0 0
    %416 = vmatmul.mubr.bf16.gmra.mrb[0].mxu0 %v91
    %v417 = vpop.f32.mrb[0].mxu0
    %v418 = vadd.f32 %v273, %v417
    %v419 = vpop.f32.mrb[0].mxu0
    %v420 = vpop.f32.mrb[0].mxu0
    %v421 = vadd.f32 %v276, %v420
    %v422 = vpop.f32.mrb[0].mxu0
    %423 = vmatprep.mubr.bf16.mxu0 0
    %424 = vmatmul.mubr.bf16.gmra.mrb[0].mxu0 %v92
    %v425 = vpop.f32.mrb[0].mxu0
    %v426 = vadd.f32 %v281, %v425
    %v427 = vpop.f32.mrb[0].mxu0
    %v428 = vpop.f32.mrb[0].mxu0
    %v429 = vadd.f32 %v284, %v428
    %v430 = vpop.f32.mrb[0].mxu0
    %431 = vmatprep.mubr.bf16.mxu0 0
    %432 = vmatmul.mubr.bf16.gmra.mrb[0].mxu0 %v93
    %v433 = vpop.f32.mrb[0].mxu0
    %v434 = vadd.f32 %v289, %v433
    %v435 = vpop.f32.mrb[0].mxu0
    %v436 = vpop.f32.mrb[0].mxu0
    %v437 = vadd.f32 %v292, %v436
    %v438 = vpop.f32.mrb[0].mxu0
    %439 = vdwg.mxu0
    %v440 = vld [vmem:[%s4] sm:$0x1]
    %v442 = vlaneseq
    %v443 = vshrl.u32 %v442, 7
    %v444 = vsub.s32 0, %v443
    %v445 = vrot.slane %v440, %v444
    %v447 = vadd.f32 %v378, %v445
    %v448 = vadd.f32 %v381, %v445
    %v449 = vadd.f32 %v386, %v445
    %v450 = vadd.f32 %v389, %v445
    %v451 = vadd.f32 %v394, %v445
    %v452 = vadd.f32 %v397, %v445
    %v453 = vadd.f32 %v402, %v445
    %v454 = vadd.f32 %v405, %v445
    %v455 = vadd.f32 %v410, %v445
    %v456 = vadd.f32 %v413, %v445
    %v457 = vadd.f32 %v418, %v445
    %v458 = vadd.f32 %v421, %v445
    %v459 = vadd.f32 %v426, %v445
    %v460 = vadd.f32 %v429, %v445
    %v461 = vadd.f32 %v434, %v445
    %v462 = vadd.f32 %v437, %v445
    %v463 = vmax.f32 %v447, 0.0
    %v464 = vmax.f32 %v448, 0.0
    %v465 = vmax.f32 %v449, 0.0
    %v466 = vmax.f32 %v450, 0.0
    %v467 = vmax.f32 %v451, 0.0
    %v468 = vmax.f32 %v452, 0.0
    %v469 = vmax.f32 %v453, 0.0
    %v470 = vmax.f32 %v454, 0.0
    %v471 = vmax.f32 %v455, 0.0
    %v472 = vmax.f32 %v456, 0.0
    %v473 = vmax.f32 %v457, 0.0
    %v474 = vmax.f32 %v458, 0.0
    %v475 = vmax.f32 %v459, 0.0
    %v476 = vmax.f32 %v460, 0.0
    %v477 = vmax.f32 %v461, 0.0
    %v478 = vmax.f32 %v462, 0.0
    %v479 = vpack.c.bf16 %v464, %v463
    %v480 = vpack.c.bf16 %v466, %v465
    %v481 = vpack.c.bf16 %v468, %v467
    %v482 = vpack.c.bf16 %v470, %v469
    %v483 = vpack.c.bf16 %v472, %v471
    %v484 = vpack.c.bf16 %v474, %v473
    %v485 = vpack.c.bf16 %v476, %v475
    %v486 = vpack.c.bf16 %v478, %v477
    %v487 = vld [vmem:[%s5] sm:$0xf]
    %v488 = vld [vmem:[%s5 + $0x4] sm:$0xf]
    %v489 = vld [vmem:[%s5 + $0x8] sm:$0xf]
    %v490 = vld [vmem:[%s5 + $0xc] sm:$0xf]
    %v491 = vld [vmem:[%s5 + $0x10] sm:$0xf]
    %v492 = vld [vmem:[%s5 + $0x14] sm:$0xf]
    %v493 = vld [vmem:[%s5 + $0x18] sm:$0xf]
    %v494 = vld [vmem:[%s5 + $0x1c] sm:$0xf]
    %v495 = vld [vmem:[%s5 + $0x20] sm:$0xf]
    %v496 = vld [vmem:[%s5 + $0x24] sm:$0xf]
    %v497 = vld [vmem:[%s5 + $0x28] sm:$0xf]
    %v498 = vld [vmem:[%s5 + $0x2c] sm:$0xf]
    %v499 = vld [vmem:[%s5 + $0x30] sm:$0xf]
    %v500 = vld [vmem:[%s5 + $0x34] sm:$0xf]
    %v501 = vld [vmem:[%s5 + $0x38] sm:$0xf]
    %v502 = vld [vmem:[%s5 + $0x3c] sm:$0xf]
    %v503 = vld [vmem:[%s6] sm:$0x1]
    %v505 = vlaneseq
    %v506 = vshrl.u32 %v505, 7
    %v507 = vsub.s32 0, %v506
    %v508 = vrot.slane %v503, %v507
    %v526 = vunpack.c.l.b16 %v487
    %v527 = vunpack.c.l.b16 %v488
    %v528 = vunpack.c.l.b16 %v489
    %v529 = vunpack.c.l.b16 %v490
    %v530 = vunpack.c.l.b16 %v491
    %v531 = vunpack.c.l.b16 %v492
    %v532 = vunpack.c.l.b16 %v493
    %v533 = vunpack.c.l.b16 %v494
    %v534 = vunpack.c.l.b16 %v495
    %v535 = vunpack.c.l.b16 %v496
    %v536 = vunpack.c.l.b16 %v497
    %v537 = vunpack.c.l.b16 %v498
    %v538 = vunpack.c.l.b16 %v499
    %v539 = vunpack.c.l.b16 %v500
    %v540 = vunpack.c.l.b16 %v501
    %v541 = vunpack.c.l.b16 %v502
    %v542 = vpack.c.b16 %v527, %v526
    %v543 = vpack.c.b16 %v529, %v528
    %v544 = vpack.c.b16 %v531, %v530
    %v545 = vpack.c.b16 %v533, %v532
    %v546 = vpack.c.b16 %v535, %v534
    %v547 = vpack.c.b16 %v537, %v536
    %v548 = vpack.c.b16 %v539, %v538
    %v549 = vpack.c.b16 %v541, %v540
    %558 = vmatprep.subr.bf16.mxu0 0
    %559 = vmatpush1.bf16.msra.mxu0 %v542
    %560 = vmatprep.subr.bf16.mxu0 0
    %561 = vmatpush1.bf16.msra.mxu0 %v543
    %562 = vmatprep.subr.bf16.mxu0 0
    %563 = vmatpush1.bf16.msra.mxu0 %v544
    %564 = vmatprep.subr.bf16.mxu0 0
    %565 = vmatpush1.bf16.msra.mxu0 %v545
    %566 = vmatprep.subr.bf16.mxu0 0
    %567 = vmatpush1.bf16.msra.mxu0 %v546
    %568 = vmatprep.subr.bf16.mxu0 0
    %569 = vmatpush1.bf16.msra.mxu0 %v547
    %570 = vmatprep.subr.bf16.mxu0 0
    %571 = vmatpush1.bf16.msra.mxu0 %v548
    %572 = vmatprep.subr.bf16.mxu0 0
    %573 = vmatpush1.bf16.msra.mxu0 %v549
    %574 = vmatprep.subr.bf16.mxu0 0
    %575 = vmatpush1.bf16.msra.mxu0 0
    %576 = vmatprep.subr.bf16.mxu0 0
    %577 = vmatpush1.bf16.msra.mxu0 0
    %578 = vmatprep.subr.bf16.mxu0 0
    %579 = vmatpush1.bf16.msra.mxu0 0
    %580 = vmatprep.subr.bf16.mxu0 0
    %581 = vmatpush1.bf16.msra.mxu0 0
    %582 = vmatprep.subr.bf16.mxu0 0
    %583 = vmatpush1.bf16.msra.mxu0 0
    %584 = vmatprep.subr.bf16.mxu0 0
    %585 = vmatpush1.bf16.msra.mxu0 0
    %586 = vmatprep.subr.bf16.mxu0 0
    %587 = vmatpush1.bf16.msra.mxu0 0
    %588 = vmatprep.subr.bf16.mxu0 0
    %589 = vmatpush1.bf16.msra.mxu0 0
    %590 = vmatprep.mubr.bf16.mxu0 0
    %591 = vmatmul.mubr.bf16.gmra.mrb[0].mxu0 %v479
    %v592 = vpop.f32.mrb[0].mxu0
    %v593 = vadd.f32 %v508, %v592
    %v594 = vpop.f32.mrb[0].mxu0
    %v595 = vpop.f32.mrb[0].mxu0
    %v596 = vadd.f32 %v508, %v595
    %v597 = vpop.f32.mrb[0].mxu0
    %598 = vmatprep.mubr.bf16.mxu0 0
    %599 = vmatmul.mubr.bf16.gmra.mrb[0].mxu0 %v480
    %v600 = vpop.f32.mrb[0].mxu0
    %v601 = vadd.f32 %v508, %v600
    %v602 = vpop.f32.mrb[0].mxu0
    %v603 = vpop.f32.mrb[0].mxu0
    %v604 = vadd.f32 %v508, %v603
    %v605 = vpop.f32.mrb[0].mxu0
    %606 = vmatprep.mubr.bf16.mxu0 0
    %607 = vmatmul.mubr.bf16.gmra.mrb[0].mxu0 %v481
    %v608 = vpop.f32.mrb[0].mxu0
    %v609 = vadd.f32 %v508, %v608
    %v610 = vpop.f32.mrb[0].mxu0
    %v611 = vpop.f32.mrb[0].mxu0
    %v612 = vadd.f32 %v508, %v611
    %v613 = vpop.f32.mrb[0].mxu0
    %614 = vmatprep.mubr.bf16.mxu0 0
    %615 = vmatmul.mubr.bf16.gmra.mrb[0].mxu0 %v482
    %v616 = vpop.f32.mrb[0].mxu0
    %v617 = vadd.f32 %v508, %v616
    %v618 = vpop.f32.mrb[0].mxu0
    %v619 = vpop.f32.mrb[0].mxu0
    %v620 = vadd.f32 %v508, %v619
    %v621 = vpop.f32.mrb[0].mxu0
    %622 = vmatprep.mubr.bf16.mxu0 0
    %623 = vmatmul.mubr.bf16.gmra.mrb[0].mxu0 %v483
    %v624 = vpop.f32.mrb[0].mxu0
    %v625 = vadd.f32 %v508, %v624
    %v626 = vpop.f32.mrb[0].mxu0
    %v627 = vpop.f32.mrb[0].mxu0
    %v628 = vadd.f32 %v508, %v627
    %v629 = vpop.f32.mrb[0].mxu0
    %630 = vmatprep.mubr.bf16.mxu0 0
    %631 = vmatmul.mubr.bf16.gmra.mrb[0].mxu0 %v484
    %v632 = vpop.f32.mrb[0].mxu0
    %v633 = vadd.f32 %v508, %v632
    %v634 = vpop.f32.mrb[0].mxu0
    %v635 = vpop.f32.mrb[0].mxu0
    %v636 = vadd.f32 %v508, %v635
    %v637 = vpop.f32.mrb[0].mxu0
    %638 = vmatprep.mubr.bf16.mxu0 0
    %639 = vmatmul.mubr.bf16.gmra.mrb[0].mxu0 %v485
    %v640 = vpop.f32.mrb[0].mxu0
    %v641 = vadd.f32 %v508, %v640
    %v642 = vpop.f32.mrb[0].mxu0
    %v643 = vpop.f32.mrb[0].mxu0
    %v644 = vadd.f32 %v508, %v643
    %v645 = vpop.f32.mrb[0].mxu0
    %646 = vmatprep.mubr.bf16.mxu0 0
    %647 = vmatmul.mubr.bf16.gmra.mrb[0].mxu0 %v486
    %v648 = vpop.f32.mrb[0].mxu0
    %v649 = vadd.f32 %v508, %v648
    %v650 = vpop.f32.mrb[0].mxu0
    %v651 = vpop.f32.mrb[0].mxu0
    %v652 = vadd.f32 %v508, %v651
    %v653 = vpop.f32.mrb[0].mxu0
    %654 = vdwg.mxu0
    %v655 = vmax.f32 %v593, 0.0
    %v656 = vmax.f32 %v596, 0.0
    %v657 = vmax.f32 %v601, 0.0
    %v658 = vmax.f32 %v604, 0.0
    %v659 = vmax.f32 %v609, 0.0
    %v660 = vmax.f32 %v612, 0.0
    %v661 = vmax.f32 %v617, 0.0
    %v662 = vmax.f32 %v620, 0.0
    %v663 = vmax.f32 %v625, 0.0
    %v664 = vmax.f32 %v628, 0.0
    %v665 = vmax.f32 %v633, 0.0
    %v666 = vmax.f32 %v636, 0.0
    %v667 = vmax.f32 %v641, 0.0
    %v668 = vmax.f32 %v644, 0.0
    %v669 = vmax.f32 %v649, 0.0
    %v670 = vmax.f32 %v652, 0.0
    %v671 = vpack.c.bf16 %v656, %v655
    %v672 = vpack.c.bf16 %v658, %v657
    %v673 = vpack.c.bf16 %v660, %v659
    %v674 = vpack.c.bf16 %v662, %v661
    %v675 = vpack.c.bf16 %v664, %v663
    %v676 = vpack.c.bf16 %v666, %v665
    %v677 = vpack.c.bf16 %v668, %v667
    %v678 = vpack.c.bf16 %v670, %v669
    %v679 = vld [vmem:[%s7] sm:$0xf]
    %v680 = vld [vmem:[%s7 + $0x4] sm:$0xf]
    %v681 = vld [vmem:[%s7 + $0x8] sm:$0xf]
    %v682 = vld [vmem:[%s7 + $0xc] sm:$0xf]
    %v683 = vld [vmem:[%s7 + $0x10] sm:$0xf]
    %v684 = vld [vmem:[%s7 + $0x14] sm:$0xf]
    %v685 = vld [vmem:[%s7 + $0x18] sm:$0xf]
    %v686 = vld [vmem:[%s7 + $0x1c] sm:$0xf]
    %v687 = vld [vmem:[%s8] sm:$0x1]
    %v689 = vlaneseq
    %v690 = vshrl.u32 %v689, 7
    %v691 = vsub.s32 0, %v690
    %v692 = vrot.slane %v687, %v691
    %v702 = vunpack.c.l.b16 %v679
    %v703 = vunpack.c.l.b16 %v680
    %v704 = vunpack.c.l.b16 %v681
    %v705 = vunpack.c.l.b16 %v682
    %v706 = vunpack.c.l.b16 %v683
    %v707 = vunpack.c.l.b16 %v684
    %v708 = vunpack.c.l.b16 %v685
    %v709 = vunpack.c.l.b16 %v686
    %v710 = vpack.c.b16 %v703, %v702
    %v711 = vpack.c.b16 %v705, %v704
    %v712 = vpack.c.b16 %v707, %v706
    %v713 = vpack.c.b16 %v709, %v708
    %vm718 = vcmask 523264
    %v720 = vsel %vm718, %v671, 0
    %v723 = vsel %vm718, %v672, 0
    %v726 = vsel %vm718, %v673, 0
    %v729 = vsel %vm718, %v674, 0
    %v732 = vsel %vm718, %v675, 0
    %v735 = vsel %vm718, %v676, 0
    %v738 = vsel %vm718, %v677, 0
    %v741 = vsel %vm718, %v678, 0
    %743 = vmatprep.subr.bf16.mxu0 0
    %744 = vmatpush1.bf16.msra.mxu0 %v710
    %745 = vmatprep.subr.bf16.mxu0 0
    %746 = vmatpush1.bf16.msra.mxu0 %v711
    %747 = vmatprep.subr.bf16.mxu0 0
    %748 = vmatpush1.bf16.msra.mxu0 %v712
    %749 = vmatprep.subr.bf16.mxu0 0
    %750 = vmatpush1.bf16.msra.mxu0 %v713
    %751 = vmatprep.subr.bf16.mxu0 0
    %752 = vmatpush1.bf16.msra.mxu0 0
    %753 = vmatprep.subr.bf16.mxu0 0
    %754 = vmatpush1.bf16.msra.mxu0 0
    %755 = vmatprep.subr.bf16.mxu0 0
    %756 = vmatpush1.bf16.msra.mxu0 0
    %757 = vmatprep.subr.bf16.mxu0 0
    %758 = vmatpush1.bf16.msra.mxu0 0
    %759 = vmatprep.subr.bf16.mxu0 0
    %760 = vmatpush1.bf16.msra.mxu0 0
    %761 = vmatprep.subr.bf16.mxu0 0
    %762 = vmatpush1.bf16.msra.mxu0 0
    %763 = vmatprep.subr.bf16.mxu0 0
    %764 = vmatpush1.bf16.msra.mxu0 0
    %765 = vmatprep.subr.bf16.mxu0 0
    %766 = vmatpush1.bf16.msra.mxu0 0
    %767 = vmatprep.subr.bf16.mxu0 0
    %768 = vmatpush1.bf16.msra.mxu0 0
    %769 = vmatprep.subr.bf16.mxu0 0
    %770 = vmatpush1.bf16.msra.mxu0 0
    %771 = vmatprep.subr.bf16.mxu0 0
    %772 = vmatpush1.bf16.msra.mxu0 0
    %773 = vmatprep.subr.bf16.mxu0 0
    %774 = vmatpush1.bf16.msra.mxu0 0
    %775 = vmatprep.mubr.bf16.mxu0 0
    %776 = vmatmul.mubr.bf16.gmra.mrb[0].mxu0 %v720
    %v777 = vpop.f32.mrb[0].mxu0
    %v778 = vadd.f32 %v692, %v777
    %v779 = vpop.f32.mrb[0].mxu0
    %v780 = vpop.f32.mrb[0].mxu0
    %v781 = vadd.f32 %v692, %v780
    %v782 = vpop.f32.mrb[0].mxu0
    %783 = vmatprep.mubr.bf16.mxu0 0
    %784 = vmatmul.mubr.bf16.gmra.mrb[0].mxu0 %v723
    %v785 = vpop.f32.mrb[0].mxu0
    %v786 = vadd.f32 %v692, %v785
    %v787 = vpop.f32.mrb[0].mxu0
    %v788 = vpop.f32.mrb[0].mxu0
    %v789 = vadd.f32 %v692, %v788
    %v790 = vpop.f32.mrb[0].mxu0
    %791 = vmatprep.mubr.bf16.mxu0 0
    %792 = vmatmul.mubr.bf16.gmra.mrb[0].mxu0 %v726
    %v793 = vpop.f32.mrb[0].mxu0
    %v794 = vadd.f32 %v692, %v793
    %v795 = vpop.f32.mrb[0].mxu0
    %v796 = vpop.f32.mrb[0].mxu0
    %v797 = vadd.f32 %v692, %v796
    %v798 = vpop.f32.mrb[0].mxu0
    %799 = vmatprep.mubr.bf16.mxu0 0
    %800 = vmatmul.mubr.bf16.gmra.mrb[0].mxu0 %v729
    %v801 = vpop.f32.mrb[0].mxu0
    %v802 = vadd.f32 %v692, %v801
    %v803 = vpop.f32.mrb[0].mxu0
    %v804 = vpop.f32.mrb[0].mxu0
    %v805 = vadd.f32 %v692, %v804
    %v806 = vpop.f32.mrb[0].mxu0
    %807 = vmatprep.mubr.bf16.mxu0 0
    %808 = vmatmul.mubr.bf16.gmra.mrb[0].mxu0 %v732
    %v809 = vpop.f32.mrb[0].mxu0
    %v810 = vadd.f32 %v692, %v809
    %v811 = vpop.f32.mrb[0].mxu0
    %v812 = vpop.f32.mrb[0].mxu0
    %v813 = vadd.f32 %v692, %v812
    %v814 = vpop.f32.mrb[0].mxu0
    %815 = vmatprep.mubr.bf16.mxu0 0
    %816 = vmatmul.mubr.bf16.gmra.mrb[0].mxu0 %v735
    %v817 = vpop.f32.mrb[0].mxu0
    %v818 = vadd.f32 %v692, %v817
    %v819 = vpop.f32.mrb[0].mxu0
    %v820 = vpop.f32.mrb[0].mxu0
    %v821 = vadd.f32 %v692, %v820
    %v822 = vpop.f32.mrb[0].mxu0
    %823 = vmatprep.mubr.bf16.mxu0 0
    %824 = vmatmul.mubr.bf16.gmra.mrb[0].mxu0 %v738
    %v825 = vpop.f32.mrb[0].mxu0
    %v826 = vadd.f32 %v692, %v825
    %v827 = vpop.f32.mrb[0].mxu0
    %v828 = vpop.f32.mrb[0].mxu0
    %v829 = vadd.f32 %v692, %v828
    %v830 = vpop.f32.mrb[0].mxu0
    %831 = vmatprep.mubr.bf16.mxu0 0
    %832 = vmatmul.mubr.bf16.gmra.mrb[0].mxu0 %v741
    %v833 = vpop.f32.mrb[0].mxu0
    %v834 = vadd.f32 %v692, %v833
    %v835 = vpop.f32.mrb[0].mxu0
    %v836 = vpop.f32.mrb[0].mxu0
    %v837 = vadd.f32 %v692, %v836
    %v838 = vpop.f32.mrb[0].mxu0
    %839 = vdwg.mxu0
    %v840 = vmax.f32 %v778, 0.0
    %v841 = vmax.f32 %v781, 0.0
    %v842 = vmax.f32 %v786, 0.0
    %v843 = vmax.f32 %v789, 0.0
    %v844 = vmax.f32 %v794, 0.0
    %v845 = vmax.f32 %v797, 0.0
    %v846 = vmax.f32 %v802, 0.0
    %v847 = vmax.f32 %v805, 0.0
    %v848 = vmax.f32 %v810, 0.0
    %v849 = vmax.f32 %v813, 0.0
    %v850 = vmax.f32 %v818, 0.0
    %v851 = vmax.f32 %v821, 0.0
    %v852 = vmax.f32 %v826, 0.0
    %v853 = vmax.f32 %v829, 0.0
    %v854 = vmax.f32 %v834, 0.0
    %v855 = vmax.f32 %v837, 0.0
    %v856 = vld [vmem:[%s9] sm:$0x1]
    %v857 = vld [vmem:[#allocation2] sm:$0x1]
    %859 = vset.pattern.permute.xlu0 0
    %860 = vperm.xlu0 %859, %v857
    %v861 = vpop.permute.xlu0 %860
    %v863 = vlaneseq
    %v864 = vshrl.u32 %v863, 7
    %v865 = vsub.s32 0, %v864
    %v866 = vrot.slane %v861, %v865
    %vm867 = vcmask 261120
    %v869 = vsel %vm867, %v856, 0
    %v872 = vsel %vm867, %v840, 0
    %v875 = vsel %vm867, %v841, 0
    %v878 = vsel %vm867, %v842, 0
    %v881 = vsel %vm867, %v843, 0
    %v884 = vsel %vm867, %v844, 0
    %v887 = vsel %vm867, %v845, 0
    %v890 = vsel %vm867, %v846, 0
    %v893 = vsel %vm867, %v847, 0
    %v896 = vsel %vm867, %v848, 0
    %v899 = vsel %vm867, %v849, 0
    %v902 = vsel %vm867, %v850, 0
    %v905 = vsel %vm867, %v851, 0
    %v908 = vsel %vm867, %v852, 0
    %v911 = vsel %vm867, %v853, 0
    %v914 = vsel %vm867, %v854, 0
    %v917 = vsel %vm867, %v855, 0
    %919 = vmatprep.subr.mxu0 0.0
    %920 = vmatpush1.xpose.msra.mxu0 %v872
    %921 = vmatprep.subr.mxu0 0.0
    %922 = vmatpush1.xpose.msra.mxu0 %v875
    %923 = vmatprep.subr.mxu0 0.0
    %924 = vmatpush1.xpose.msra.mxu0 %v878
    %925 = vmatprep.subr.mxu0 0.0
    %926 = vmatpush1.xpose.msra.mxu0 %v881
    %927 = vmatprep.subr.mxu0 0.0
    %928 = vmatpush1.xpose.msra.mxu0 %v884
    %929 = vmatprep.subr.mxu0 0.0
    %930 = vmatpush1.xpose.msra.mxu0 %v887
    %931 = vmatprep.subr.mxu0 0.0
    %932 = vmatpush1.xpose.msra.mxu0 %v890
    %933 = vmatprep.subr.mxu0 0.0
    %934 = vmatpush1.xpose.msra.mxu0 %v893
    %935 = vmatprep.subr.mxu0 0.0
    %936 = vmatpush1.xpose.msra.mxu0 %v896
    %937 = vmatprep.subr.mxu0 0.0
    %938 = vmatpush1.xpose.msra.mxu0 %v899
    %939 = vmatprep.subr.mxu0 0.0
    %940 = vmatpush1.xpose.msra.mxu0 %v902
    %941 = vmatprep.subr.mxu0 0.0
    %942 = vmatpush1.xpose.msra.mxu0 %v905
    %943 = vmatprep.subr.mxu0 0.0
    %944 = vmatpush1.xpose.msra.mxu0 %v908
    %945 = vmatprep.subr.mxu0 0.0
    %946 = vmatpush1.xpose.msra.mxu0 %v911
    %947 = vmatprep.subr.mxu0 0.0
    %948 = vmatpush1.xpose.msra.mxu0 %v914
    %949 = vmatprep.subr.mxu0 0.0
    %950 = vmatpush1.xpose.msra.mxu0 %v917
    %951 = vmatprep.subr.mxu0 0.0
    %952 = vmatpush1.xpose.msra.mxu0 0.0
    %953 = vmatprep.subr.mxu0 0.0
    %954 = vmatpush1.xpose.msra.mxu0 0.0
    %955 = vmatprep.subr.mxu0 0.0
    %956 = vmatpush1.xpose.msra.mxu0 0.0
    %957 = vmatprep.subr.mxu0 0.0
    %958 = vmatpush1.xpose.msra.mxu0 0.0
    %959 = vmatprep.subr.mxu0 0.0
    %960 = vmatpush1.xpose.msra.mxu0 0.0
    %961 = vmatprep.subr.mxu0 0.0
    %962 = vmatpush1.xpose.msra.mxu0 0.0
    %963 = vmatprep.subr.mxu0 0.0
    %964 = vmatpush1.xpose.msra.mxu0 0.0
    %965 = vmatprep.subr.mxu0 0.0
    %966 = vmatpush1.xpose.msra.mxu0 0.0
    %967 = vmatprep.subr.mxu0 0.0
    %968 = vmatpush1.xpose.msra.mxu0 0.0
    %969 = vmatprep.subr.mxu0 0.0
    %970 = vmatpush1.xpose.msra.mxu0 0.0
    %971 = vmatprep.subr.mxu0 0.0
    %972 = vmatpush1.xpose.msra.mxu0 0.0
    %973 = vmatprep.subr.mxu0 0.0
    %974 = vmatpush1.xpose.msra.mxu0 0.0
    %975 = vmatprep.subr.mxu0 0.0
    %976 = vmatpush1.xpose.msra.mxu0 0.0
    %977 = vmatprep.subr.mxu0 0.0
    %978 = vmatpush1.xpose.msra.mxu0 0.0
    %979 = vmatprep.subr.mxu0 0.0
    %980 = vmatpush1.xpose.msra.mxu0 0.0
    %981 = vmatprep.subr.mxu0 0.0
    %982 = vmatpush1.xpose.msra.mxu0 0.0
    %983 = vmatprep.mubr.f32.mxu0 0.0
    %984 = vmatmul.mubr.f32.gmra.mrb[0].mxu0 %v869
    %v985 = vpop.f32.mrb[0].mxu0
    %v986 = vadd.f32 %v866, %v985
    %v987 = vpop.f32.mrb[0].mxu0
    %988 = vdwg.mxu0
    %989 = vst [vmem:[#allocation8] sm:$0x1] %v986
    // Predicated region
    $region54: #{tpu_custom_call.1} parent=1 // pred_check
      _
    $region55: #{tpu_custom_call.1} parent=1 // pred_check_branch
      %991 = sbr.rel (0) target = $region57
    $region56: #{tpu_custom_call.1} parent=1 // pred_region
      %s993 = ssub.s32 16, 16
      %994 = vsyncadd [#allocation5], %s993
      %s996 = sshll.u32 [#allocation8], 4
      %s997 = int_to_ptr.vmem [resolvable:$true] %s996
      %999 = dma.vmem_to_hbm [thread:$0]  %s997, 16, %s11, [#allocation5]
    $region57: #{tpu_custom_call.1} parent=1 // pred_fallthru
      _
    // Predicated region
    $region58: #{tpu_custom_call.1} parent=1 // pred_check
      _
    $region59: #{tpu_custom_call.1} parent=1 // pred_check_branch
      %1001 = sbr.rel (0) target = $region61
    $region60: #{tpu_custom_call.1} parent=1 // pred_region
      %1002 = dma.done [#allocation5], 16
    $region61: #{tpu_custom_call.1} parent=1 // pred_fallthru
      _
    %1003 = vsyncpa [#allocation4], 1
    %1004 = vsyncpa [#allocation7], 1
    %1005 = vsyncpa [#allocation5], 1

</llo_original>
